<compile_context>
chip_gen: v7x
topology: tpu7x:2x2x1
jax: 0.10.0
libtpu: 0.0.40
codegen_flags: <defaults>
</compile_context>

<pallas_src>
import math

import jax
import jax.numpy as jnp
from jax.experimental import pallas as pl
from jax.experimental.pallas import tpu as pltpu

_TWO_PI = 2.0 * math.pi
_HALF_PI = 0.5 * math.pi


def _pos_emb_kernel(x_ref, w_ref, ph_ref, o_ref):
    # x_ref  : (tm, 1)        timesteps for this row tile
    # w_ref  : (1, dim_out)   [0, w_0..w_{h-1}, w_0..w_{h-1}]   (resident)
    # ph_ref : (1, dim_out)   [0, 0..0,         pi/2..pi/2]     (resident)
    # o_ref  : (tm, dim_out)  [x, sin(freqs), cos(freqs)]
    x = x_ref[...].astype(jnp.float32)                        # (tm, 1)
    t = x * w_ref[...] * _TWO_PI + ph_ref[...]                 # (tm, dim_out)
    vals = jnp.sin(t)                                          # single EUP pass (cos == sin(+pi/2))
    col = jax.lax.broadcasted_iota(jnp.int32, t.shape, 1)
    out = jnp.where(col == 0, x, vals)                         # column 0 carries the raw timestep
    o_ref[...] = out.astype(o_ref.dtype)                       # one aligned full-block store


def _tensorcores_per_device():
    """2 for chips exposing two TensorCores per device (v7x, megacore), else 1."""
    try:
        kind = jax.devices()[0].device_kind.lower()
    except Exception:  # pragma: no cover - defensive; never fail the wrapper on introspection
        return 1
    if "7" in kind or "v4" in kind or "v5p" in kind:
        return 2
    return 1


def _per_row_bytes(dim_out, out_dtype):
    out_b = jnp.dtype(out_dtype).itemsize
    # double-buffered pipeline buffers (x block + out block) + ~4 f32-wide in-kernel temporaries
    return 2 * (4 + dim_out * out_b) + 4 * 4 * dim_out


def _pick_tm(batch, dim_out, out_dtype, num_row_tiles, *, vmem_budget_bytes=8 * 1024 * 1024):
    """Largest row tile that fits the VMEM budget; grid==1 preferred on single-TC chips."""
    align = 16 if jnp.dtype(out_dtype).itemsize == 2 else 8    # bf16 packs 16 sublanes/vreg
    per_row = _per_row_bytes(dim_out, out_dtype)
    cap = max(align, (vmem_budget_bytes // per_row) // align * align)
    if num_row_tiles <= 1 and batch <= cap:
        return batch                                           # one full-extent block (always legal)
    tm = pl.cdiv(batch, num_row_tiles)
    tm = pl.cdiv(tm, align) * align                            # sublane-aligned; trailing block clipped
    return min(min(tm, cap), batch)


def random_or_learned_sinusoidal_pos_emb(x, weights, *, tm=None, num_row_tiles=None):
    """JAX/Pallas equivalent of RandomOrLearnedSinusoidalPosEmb.forward."""
    assert x.ndim == 1, "expected x of shape (B,)"
    assert weights.ndim == 1, "expected weights of shape (half_dim,)"
    batch = x.shape[0]
    half_dim = weights.shape[0]
    dim_out = 2 * half_dim + 1
    out_dtype = jnp.promote_types(x.dtype, weights.dtype)

    if num_row_tiles is None:
        # Split across TensorCores only when each tile is large enough that the extra grid step
        # (~0.35us) is negligible; single-TC chips (v5e/v6e) always get one full-extent block.
        num_row_tiles = _tensorcores_per_device() if batch >= 1024 else 1
    if tm is None:
        tm = _pick_tm(batch, dim_out, out_dtype, num_row_tiles)
    tm = min(tm, batch)
    grid = pl.cdiv(batch, tm)

    # Tiny (1, dim_out) setup rows built once outside the kernel:
    #   w_full = [0, w, w]     phase = [0, 0..0, pi/2..pi/2]
    # so that sin(x*w_full*2pi + phase) yields [<col 0, patched to x>, sin(freqs), cos(freqs)].
    w_f32 = weights.astype(jnp.float32)
    w_full = jnp.concatenate([jnp.zeros((1,), jnp.float32), w_f32, w_f32]).reshape(1, dim_out)
    phase = jnp.concatenate(
        [jnp.zeros((1 + half_dim,), jnp.float32),
         jnp.full((half_dim,), _HALF_PI, jnp.float32)]).reshape(1, dim_out)

    x2 = x.reshape(batch, 1)

    # Scoped-VMEM limit derived from the actual footprint (a few KB..MB), not a blanket 48 MiB.
    per_row = _per_row_bytes(dim_out, out_dtype)
    vmem_limit_bytes = int(min(64 << 20, max(8 << 20, 2 * tm * per_row)))

    return pl.pallas_call(
        _pos_emb_kernel,
        out_shape=jax.ShapeDtypeStruct((batch, dim_out), out_dtype),
        grid_spec=pltpu.PrefetchScalarGridSpec(
            num_scalar_prefetch=0,
            grid=(grid,),
            in_specs=[
                pl.BlockSpec((tm, 1), lambda i: (i, 0)),           # timesteps, tiled over rows
                pl.BlockSpec((1, dim_out), lambda i: (0, 0)),      # fused frequency row, resident
                pl.BlockSpec((1, dim_out), lambda i: (0, 0)),      # phase row, resident
            ],
            out_specs=pl.BlockSpec((tm, dim_out), lambda i: (i, 0)),
        ),
        compiler_params=pltpu.CompilerParams(
            dimension_semantics=("parallel",),
            vmem_limit_bytes=vmem_limit_bytes,
        ),
    )(x2, w_full, phase)


def _reference(x, weights):
    """Pure-jnp reference mirroring the PyTorch forward exactly."""
    x2 = x[:, None]
    freqs = x2 * weights[None, :] * _TWO_PI
    fouriered = jnp.concatenate([jnp.sin(freqs), jnp.cos(freqs)], axis=-1)
    return jnp.concatenate([x2, fouriered], axis=-1)


if __name__ == "__main__":
    key = jax.random.PRNGKey(0)
    k1, k2, k3, k4 = jax.random.split(key, 4)

    # ---- Case 1: dim=32 (half_dim=16), B=8 -> single full-extent block (grid == 1) ----
    B1, dim1 = 8, 32
    x1 = jax.random.normal(k1, (B1,), dtype=jnp.float32)               # timesteps
    w1 = jax.random.normal(k2, (dim1 // 2,), dtype=jnp.float32)        # nn.Parameter(randn(half_dim))
    y1 = jax.block_until_ready(random_or_learned_sinusoidal_pos_emb(x1, w1))
    ref1 = _reference(x1, w1)
    assert y1.shape == (B1, dim1 + 1)
    assert jnp.allclose(y1, ref1, atol=1e-4, rtol=1e-4)

    # ---- Case 2: dim=64, B=100, forced small tile -> multi-step grid with a clipped
    #      partial trailing block (exercises the no-pad / no-slice path) ----
    B2, dim2 = 100, 64
    x2 = jax.random.uniform(k3, (B2,), dtype=jnp.float32)
    w2 = jax.random.normal(k4, (dim2 // 2,), dtype=jnp.float32)
    y2 = jax.block_until_ready(random_or_learned_sinusoidal_pos_emb(x2, w2, tm=16))
    ref2 = _reference(x2, w2)
    assert y2.shape == (B2, dim2 + 1)
    assert jnp.allclose(y2, ref2, atol=1e-4, rtol=1e-4)

    # ---- Case 3: explicit 2-way "parallel" row split (the v7x two-TensorCore path) ----
    B3, dim3 = 64, 32
    x3 = jax.random.normal(k1, (B3,), dtype=jnp.float32)
    w3 = jax.random.normal(k2, (dim3 // 2,), dtype=jnp.float32)
    y3 = jax.block_until_ready(
        random_or_learned_sinusoidal_pos_emb(x3, w3, num_row_tiles=2))
    ref3 = _reference(x3, w3)
    assert y3.shape == (B3, dim3 + 1)
    assert jnp.allclose(y3, ref3, atol=1e-4, rtol=1e-4)

    print("KERNEL_OK")
</pallas_src>

<mosaic_0001>
module attributes {stable_mosaic.version = 11 : i64} {
  func.func @_pos_emb_kernel(%arg0: i32, %arg1: memref<8x1xf32, #tpu.memory_space<vmem>>, %arg2: memref<1x33xf32, #tpu.memory_space<vmem>>, %arg3: memref<1x33xf32, #tpu.memory_space<vmem>>, %arg4: memref<8x33xf32, #tpu.memory_space<vmem>>) attributes {dimension_semantics = [#tpu.dimension_semantics<parallel>], iteration_bounds = array<i64: 1>, scalar_prefetch = 0 : i64, scratch_operands = 0 : i64, tpu.core_type = #tpu.core_type<tc>, window_params = [{transform_indices = @transform_0, window_bounds = array<i64: 8, 1>}, {pipeline_mode = #tpu.pipeline_mode<synchronous>, transform_indices = @transform_1, window_bounds = array<i64: 1, 33>}, {pipeline_mode = #tpu.pipeline_mode<synchronous>, transform_indices = @transform_2, window_bounds = array<i64: 1, 33>}, {transform_indices = @transform_3, window_bounds = array<i64: 8, 33>}]} {
    %c0 = arith.constant 0 : index
    %c0_0 = arith.constant 0 : index
    %0 = vector.load %arg1[%c0, %c0_0] : memref<8x1xf32, #tpu.memory_space<vmem>>, vector<8x1xf32>
    %c0_1 = arith.constant 0 : index
    %c0_2 = arith.constant 0 : index
    %1 = vector.load %arg2[%c0_1, %c0_2] : memref<1x33xf32, #tpu.memory_space<vmem>>, vector<1x33xf32>
    %2 = vector.broadcast %0 : vector<8x1xf32> to vector<8x33xf32>
    %3 = vector.broadcast %1 : vector<1x33xf32> to vector<8x33xf32>
    %4 = arith.mulf %2, %3 : vector<8x33xf32>
    %cst = arith.constant 6.28318548 : f32
    %5 = vector.broadcast %cst : f32 to vector<8x33xf32>
    %6 = arith.mulf %4, %5 : vector<8x33xf32>
    %c0_3 = arith.constant 0 : index
    %c0_4 = arith.constant 0 : index
    %7 = vector.load %arg3[%c0_3, %c0_4] : memref<1x33xf32, #tpu.memory_space<vmem>>, vector<1x33xf32>
    %8 = vector.broadcast %7 : vector<1x33xf32> to vector<8x33xf32>
    %9 = arith.addf %6, %8 : vector<8x33xf32>
    %10 = math.sin %9 : vector<8x33xf32>
    %11 = tpu.iota {dimensions = array<i32: 1>} : vector<8x33xi32>
    %c0_i32 = arith.constant 0 : i32
    %12 = vector.broadcast %c0_i32 : i32 to vector<8x33xi32>
    %13 = arith.cmpi eq, %11, %12 : vector<8x33xi32>
    %14 = vector.shape_cast %0 : vector<8x1xf32> to vector<8x1xf32>
    %15 = vector.broadcast %14 : vector<8x1xf32> to vector<8x33xf32>
    %16 = arith.select %13, %15, %10 : vector<8x33xi1>, vector<8x33xf32>
    %c0_5 = arith.constant 0 : index
    %c0_6 = arith.constant 0 : index
    %17 = vector.load %arg4[%c0_5, %c0_6] : memref<8x33xf32, #tpu.memory_space<vmem>>, vector<8x33xf32>
    tpu.vector_store %arg4[%c0_5, %c0_6], %16 {strides = array<i32>} : memref<8x33xf32, #tpu.memory_space<vmem>>, vector<8x33xf32>,
    return
  }
  func.func @transform_0(%arg0: i32) -> (i32, i32) {
    %c0_i32 = arith.constant 0 : i32
    %c0_i32_0 = arith.constant 0 : i32
    return %arg0, %c0_i32 : i32, i32
  }
  func.func @transform_1(%arg0: i32) -> (i32, i32) {
    %c0_i32 = arith.constant 0 : i32
    %c0_i32_0 = arith.constant 0 : i32
    %c0_i32_1 = arith.constant 0 : i32
    return %c0_i32, %c0_i32_0 : i32, i32
  }
  func.func @transform_2(%arg0: i32) -> (i32, i32) {
    %c0_i32 = arith.constant 0 : i32
    %c0_i32_0 = arith.constant 0 : i32
    %c0_i32_1 = arith.constant 0 : i32
    return %c0_i32, %c0_i32_0 : i32, i32
  }
  func.func @transform_3(%arg0: i32) -> (i32, i32) {
    %c0_i32 = arith.constant 0 : i32
    %c0_i32_0 = arith.constant 0 : i32
    return %arg0, %c0_i32 : i32, i32
  }
}

</mosaic_0001>

<llo_original>
// kernel: tpu_custom_call.1
$region0: #{tpu_custom_call.1}
  #allocation0 [shape = 'u32[]', space=smem, size = 0x4, offset = 0x4, fixed_abs, tag = 'smem constant byte address 0x4 - core index']
  #allocation1 [shape = 'u32[144,128]{1,0:T(1,128)}', space=vmem, size = 0x12000, scoped, tag = 'internal scratch']
  %s0 = inlined_call_operand.vmem [shape: f32[8,1], index: 0, kind: input, shape index: {}]
  %s1 = inlined_call_operand.vmem [shape: f32[1,33], index: 1, kind: input, shape index: {}]
  %s2 = inlined_call_operand.vmem [shape: f32[1,33], index: 2, kind: input, shape index: {}]
  %s3 = inlined_call_operand.hbm [shape: f32[8,33], index: 3, kind: output, shape index: {}]
  %s4 = sld [smem:[#allocation0]]
  $region22: #{tpu_custom_call.1} parent=0
    _
  %s6 = ssub.s32 1, %s4
  %s7 = scalar_select 0, %s6, %s4
  $region1: #{tpu_custom_call.1} parent=0
    #allocation2 [shape = 'u8[4096]{0}', space=vmem, size = 0x1000, scoped, tag = 'output window, operand 0, single buffered']
    #allocation3 [shape = 's32[1]{0}', space=sflag, size = 0x4, scoped, tag = 'scoped memory for tpu_custom_call.1']
    %8 = vsyncpa [#allocation3], 0
    // Predicated region
    $region2: #{tpu_custom_call.1} parent=1 // pred_check
      _
    $region3: #{tpu_custom_call.1} parent=1 // pred_check_branch
      %10 = sbr.rel (0) target = $region5
    $region4: #{tpu_custom_call.1} parent=1 // pred_region
      _
    $region5: #{tpu_custom_call.1} parent=1 // pred_fallthru
      _
    // Predicated region
    $region6: #{tpu_custom_call.1} parent=1 // pred_check
      _
    $region7: #{tpu_custom_call.1} parent=1 // pred_check_branch
      %12 = sbr.rel (0) target = $region9
    $region8: #{tpu_custom_call.1} parent=1 // pred_region
      _
    $region9: #{tpu_custom_call.1} parent=1 // pred_fallthru
      _
    // Predicated region
    $region10: #{tpu_custom_call.1} parent=1 // pred_check
      _
    $region11: #{tpu_custom_call.1} parent=1 // pred_check_branch
      %14 = sbr.rel (0) target = $region13
    $region12: #{tpu_custom_call.1} parent=1 // pred_region
      _
    $region13: #{tpu_custom_call.1} parent=1 // pred_fallthru
      _
    %v15 = vld [vmem:[%s0] sm:$0xff]
    %v16 = vld [vmem:[%s1] sm:$0x1]
    %18 = vset.pattern.permute.xlu0 0
    %19 = vperm.xlu0 %18, %v15
    %v20 = vpop.permute.xlu0 %19
    %v23 = vlaneseq
    %v24 = vshrl.u32 %v23, 7
    %v25 = vsub.s32 0, %v24
    %v26 = vrot.slane %v16, %v25
    %v28 = vmul.f32 %v20, %v26
    %v29 = vmul.f32 %v28, 6.2831855
    %v30 = vld [vmem:[%s2] sm:$0x1]
    %v32 = vlaneseq
    %v33 = vshrl.u32 %v32, 7
    %v34 = vsub.s32 0, %v33
    %v35 = vrot.slane %v30, %v34
    %v37 = vadd.f32 %v29, %v35
    %v38 = vand.u32 2147483647, %v37
    %vm39 = vcmp.le.f32.partialorder %v38, 0.7853982
    %vm40 = vcmp.lt.s32.totalorder %v37, 0
    %v41 = vand.u32 %v37, 2139095040
    %v42 = vshrl.u32 %v41, 23
    %v43 = vsub.s32 %v42, 127
    %v44 = vand.u32 2147483647, %v37
    %v45 = vand.u32 %v44, 8388607
    %v46 = vor.u32 %v45, 8388608
    %v47 = vsub.s32 0, %v46
    %v48 = vadd.s32 %v43, 1
    %vm49 = vcmp.gt.s32.totalorder %v48, 0
    %v50 = vsel %vm49, %v48, 0
    %v51 = vshrl.u32 %v50, 5
    %v52 = vand.u32 %v50, 31
    %v53 = vsub.s32 32, %v52
    %v54 = vshrl.u32 683565275, %v53
    %v55 = vshll.u32 683565275, %v52
    %v56 = vshrl.u32 2475754826, %v53
    %v57 = vor.u32 %v55, %v56
    %v58 = vshll.u32 2475754826, %v52
    %v59 = vshrl.u32 2131351028, %v53
    %v60 = vor.u32 %v58, %v59
    %v61 = vshll.u32 2131351028, %v52
    %v62 = vshrl.u32 2102212464, %v53
    %v63 = vor.u32 %v61, %v62
    %v64 = vshll.u32 2102212464, %v52
    %v65 = vshrl.u32 920167782, %v53
    %v66 = vor.u32 %v64, %v65
    %v67 = vshll.u32 920167782, %v52
    %v68 = vshrl.u32 1326507024, %v53
    %v69 = vor.u32 %v67, %v68
    %vm70 = vcmp.lt.s32.totalorder %v51, 1
    %vm71 = vcmp.lt.s32.totalorder %v51, 2
    %vm72 = vcmp.lt.s32.totalorder %v51, 3
    %vm73 = vcmp.lt.s32.totalorder %v51, 4
    %v74 = vsel %vm70, %v54, %v57
    %v75 = vsel %vm73, %v63, 2102212464
    %v76 = vsel %vm72, %v60, %v75
    %v77 = vsel %vm71, %v74, %v76
    %v78 = vsel %vm70, %v57, %v60
    %v79 = vsel %vm73, %v66, 920167782
    %v80 = vsel %vm72, %v63, %v79
    %v81 = vsel %vm71, %v78, %v80
    %v82 = vsel %vm70, %v60, %v63
    %v83 = vsel %vm73, %v69, 1326507024
    %v84 = vsel %vm72, %v66, %v83
    %v85 = vsel %vm71, %v82, %v84
    %v86 = vshll.u32 %v46, 8
    %v87 = vmul.u32.u64.compose %v86, %v85
    %v88 = vextract.low.u32 %v87
    %v89 = vextract.high.u32 %v87
    %v90 = vmul.u32.u64.compose %v86, %v81
    %v91 = vextract.low.u32 %v90
    %v92 = vextract.high.u32 %v90
    %v93 = vmul.u32 %v86, %v77
    %v94 = vadd.s32 %v89, %v91
    %vm95 = vc.u32 %v89, %v91
    %v96 = vadd.s32 %v92, 1
    %v97 = vsel %vm95, %v96, %v92
    %v98 = vadd.s32 %v93, %v97
    %v99 = vadd.s32 %v98, 536870912
    %v100 = vshrl.u32 %v99, 30
    %v101 = vshll.u32 %v100, 30
    %v102 = vsub.s32 %v98, %v101
    %vm103 = vcmp.lt.s32.totalorder %v102, 0
    %v104 = vsub.s32 0, %v102
    %v105 = vsel %vm103, %v104, %v102
    %v106 = vclz %v105
    %v107 = vsub.s32 %v106, 2
    %vm108 = vcmp.gt.s32.totalorder 0, %v107
    %v109 = vsel %vm108, 0, %v107
    %v110 = vsub.s32 32, %v109
    %v111 = vshll.u32 %v102, %v109
    %v112 = vshrl.u32 %v94, %v110
    %v113 = vor.u32 %v111, %v112
    %v114 = vsub.s32 4294967266, %v109
    %v115 = vadd.s32 %v114, 127
    %v116 = vshll.u32 %v115, 23
    %v117 = vor.u32 4788187, %v116
    %v118 = vand.u32 2147483647, %v117
    %v120 = vcvt.s32.f32 %v113
    %v121 = vmul.f32 %v120, %v118
    %v122 = vxor.u32 %v121, 2147483648
    %v123 = vsel %vm40, %v122, %v121
    %v124 = vsub.s32 4, %v100
    %v125 = vsel %vm40, %v124, %v100
    %v126 = vsel %vm39, %v37, %v123
    %v127 = vsel %vm39, 0, %v125
    %v128 = vcosq.f32.pop %v126
    %v129 = vsinq.f32.pop %v126
    %vm130 = vweird.f32 %v37
    %v131 = vadd.s32 %v127, 3
    %v132 = vand.u32 %v131, 3
    %vm133 = vcmp.lt.s32.totalorder %v132, 2
    %vm134 = vcmp.eq.s32.totalorder %v132, 0
    %v135 = vxor.u32 %v129, 2147483648
    %v136 = vsel %vm134, %v128, %v135
    %vm137 = vcmp.eq.s32.totalorder %v132, 2
    %v138 = vxor.u32 %v128, 2147483648
    %v139 = vsel %vm137, %v138, %v129
    %v140 = vsel %vm133, %v136, %v139
    %v141 = vsel %vm130, nan, %v140
    %v142 = vlaneseq
    %v143 = vand.u32 %v142, 127
    %vm144 = vcmp.eq.s32.totalorder %v143, 0
    %v145 = vsel %vm144, %v20, %v141
    %vm146 = vcmask 269312
    %147 = vst.msk [vmem:[#allocation2] sm:$0xff] %vm146, %v145
    // Predicated region
    $region14: #{tpu_custom_call.1} parent=1 // pred_check
      _
    $region15: #{tpu_custom_call.1} parent=1 // pred_check_branch
      %149 = sbr.rel (0) target = $region17
    $region16: #{tpu_custom_call.1} parent=1 // pred_region
      %s151 = ssub.s32 128, 128
      %152 = vsyncadd [#allocation3], %s151
      %s154 = sshll.u32 [#allocation2], 4
      %s155 = int_to_ptr.vmem [resolvable:$true] %s154
      %157 = dma.vmem_to_hbm [thread:$0]  %s155, 128, %s3, [#allocation3]
    $region17: #{tpu_custom_call.1} parent=1 // pred_fallthru
      _
    // Predicated region
    $region18: #{tpu_custom_call.1} parent=1 // pred_check
      _
    $region19: #{tpu_custom_call.1} parent=1 // pred_check_branch
      %159 = sbr.rel (0) target = $region21
    $region20: #{tpu_custom_call.1} parent=1 // pred_region
      %160 = dma.done [#allocation3], 128
    $region21: #{tpu_custom_call.1} parent=1 // pred_fallthru
      _
    %161 = vsyncpa [#allocation3], 1

</llo_original>
